<compile_context>
chip_gen: v5e
topology: v5e:2x2
jax: 0.10.0
libtpu: 0.0.40
codegen_flags: <defaults>
</compile_context>

<pallas_src>
import jax
import jax.numpy as jnp
from jax.experimental import pallas as pl
from jax.experimental.pallas import tpu as pltpu


def _lta_kernel(tvec_ref, x_ref, o_ref):
    """Fused broadcast-add + ReLU for one (row-tile, spatial-tile).

    tvec_ref: (tr, 1)  f32 precomputed time-MLP values for these B*C rows
    x_ref:    (tr, ts) lane-dense input tile
    o_ref:    (tr, ts) output tile
    """
    y = x_ref[...].astype(jnp.float32) + tvec_ref[...]        # (tr, ts) + (tr, 1)
    o_ref[...] = jnp.maximum(y, 0.0).astype(o_ref.dtype)      # pointwise ReLU


def _cdiv(a, b):
    return (a + b - 1) // b


def _round_up(v, m):
    return _cdiv(v, m) * m


def _choose_tiles(R, S, itemsize, budget_bytes=8 << 20, min_grid_steps=4):
    """Pick (tr, ts): tr multiple of 8 (rows), ts multiple of 128 (lanes).

    Start from the whole (padded) array, shrink the spatial tile first (keeps
    tvec-block reuse high since rows are the outer grid axis), then the row
    tile, until one block fits the per-block budget.  Then, if the grid would
    have fewer than `min_grid_steps` steps, shrink further so a v7x megacore
    can shard the stream across both TensorCores."""
    tr = _round_up(R, 8)
    ts = _round_up(S, 128)

    def block_bytes(tr_, ts_):
        return tr_ * ts_ * itemsize

    while block_bytes(tr, ts) > budget_bytes and ts > 128:
        ts = _round_up(ts // 2, 128)
    while block_bytes(tr, ts) > budget_bytes and tr > 8:
        tr = _round_up(tr // 2, 8)

    def steps(tr_, ts_):
        return _cdiv(R, tr_) * _cdiv(S, ts_)

    while steps(tr, ts) < min_grid_steps and (ts > 128 or tr > 8):
        if ts > 128:
            ts = _round_up(ts // 2, 128)
        else:
            tr = _round_up(tr // 2, 8)

    return tr, ts


def linear_time_activation(x, t, w, bias):
    """x: (B, C, D, H, W), t: (B, time_dim), w: (C, time_dim), bias: (C,)."""
    B, C, D, H, W = x.shape
    S = D * H * W
    time_dim = t.shape[1]
    assert w.shape == (C, time_dim) and bias.shape == (C,)

    # Hoisted time MLP: tiny (B, C) matmul done once in plain JAX, in f32.
    t_out = (t.astype(jnp.float32) @ w.astype(jnp.float32).T
             + bias.astype(jnp.float32))                       # (B, C) f32

    # Collapse batch and channel into a single row axis.
    R = B * C
    x_flat = x.reshape(R, S)
    tvec = t_out.reshape(R, 1)                                 # (R, 1) f32

    tr, ts = _choose_tiles(R, S, x.dtype.itemsize)

    # Pad ragged shapes up to tile multiples; padded region is discarded below.
    Rp = _round_up(R, tr)
    Sp = _round_up(S, ts)
    if Rp != R or Sp != S:
        x_flat = jnp.pad(x_flat, ((0, Rp - R), (0, Sp - S)))
        tvec = jnp.pad(tvec, ((0, Rp - R), (0, 0)))

    grid = (Rp // tr, Sp // ts)   # row axis outer -> tvec block reused across j

    out = pl.pallas_call(
        _lta_kernel,
        out_shape=jax.ShapeDtypeStruct((Rp, Sp), x.dtype),
        grid_spec=pltpu.PrefetchScalarGridSpec(
            num_scalar_prefetch=0,
            grid=grid,
            in_specs=[
                pl.BlockSpec((tr, 1), lambda i, j: (i, 0)),    # time vector rows
                pl.BlockSpec((tr, ts), lambda i, j: (i, j)),   # lane-dense x tile
            ],
            out_specs=pl.BlockSpec((tr, ts), lambda i, j: (i, j)),
        ),
        compiler_params=pltpu.CompilerParams(
            dimension_semantics=("parallel", "parallel"),
            vmem_limit_bytes=48 << 20),
    )(tvec, x_flat)

    out = out[:R, :S]
    return out.reshape(B, C, D, H, W)


if __name__ == "__main__":
    # Small shapes consistent with the module: 5-D geometric tensor + time vector.
    # D=H=W=6 -> S=216 (not a multiple of 128) to exercise the ragged/padded path.
    B, C, D, H, W = 2, 16, 6, 6, 6
    TIME_DIM = 8

    key = jax.random.PRNGKey(0)
    kx, kt, kw, kb = jax.random.split(key, 4)

    x = jax.random.normal(kx, (B, C, D, H, W), dtype=jnp.float32)
    t = jax.random.normal(kt, (B, TIME_DIM), dtype=jnp.float32)
    # Deterministic synthetic parameters for the time MLP (escnn Linear):
    # weight (out_features=C, in_features=TIME_DIM), bias (C,).
    w = 0.1 * jax.random.normal(kw, (C, TIME_DIM), dtype=jnp.float32)
    bias = 0.05 * jax.random.normal(kb, (C,), dtype=jnp.float32)

    out = linear_time_activation(x, t, w, bias)
    out = jax.block_until_ready(out)

    # Pure-JAX reference for sanity.
    t_out = t @ w.T + bias                                     # (B, C)
    ref = jnp.maximum(x + t_out[:, :, None, None, None], 0.0)
    assert out.shape == (B, C, D, H, W)
    assert jnp.allclose(out, ref, atol=1e-5, rtol=1e-5), "mismatch vs reference"

    print("KERNEL_OK")
</pallas_src>

<mosaic_0001>
module attributes {stable_mosaic.version = 11 : i64} {
  func.func @_lta_kernel(%arg0: i32, %arg1: i32, %arg2: memref<16x1xf32, #tpu.memory_space<vmem>>, %arg3: memref<16x128xf32, #tpu.memory_space<vmem>>, %arg4: memref<16x128xf32, #tpu.memory_space<vmem>>) attributes {dimension_semantics = [#tpu.dimension_semantics<parallel>, #tpu.dimension_semantics<parallel>], iteration_bounds = array<i64: 2, 2>, scalar_prefetch = 0 : i64, scratch_operands = 0 : i64, tpu.core_type = #tpu.core_type<tc>, window_params = [{transform_indices = @transform_0, window_bounds = array<i64: 16, 1>}, {transform_indices = @transform_1, window_bounds = array<i64: 16, 128>}, {transform_indices = @transform_2, window_bounds = array<i64: 16, 128>}]} {
    %c0 = arith.constant 0 : index
    %c0_0 = arith.constant 0 : index
    %0 = vector.load %arg3[%c0, %c0_0] : memref<16x128xf32, #tpu.memory_space<vmem>>, vector<16x128xf32>
    %c0_1 = arith.constant 0 : index
    %c0_2 = arith.constant 0 : index
    %1 = vector.load %arg2[%c0_1, %c0_2] : memref<16x1xf32, #tpu.memory_space<vmem>>, vector<16x1xf32>
    %2 = vector.broadcast %1 : vector<16x1xf32> to vector<16x128xf32>
    %3 = arith.addf %0, %2 : vector<16x128xf32>
    %cst = arith.constant 0.000000e+00 : f32
    %4 = vector.broadcast %cst : f32 to vector<16x128xf32>
    %5 = arith.maximumf %3, %4 : vector<16x128xf32>
    %c0_3 = arith.constant 0 : index
    %c0_4 = arith.constant 0 : index
    %6 = vector.load %arg4[%c0_3, %c0_4] : memref<16x128xf32, #tpu.memory_space<vmem>>, vector<16x128xf32>
    tpu.vector_store %arg4[%c0_3, %c0_4], %5 {strides = array<i32>} : memref<16x128xf32, #tpu.memory_space<vmem>>, vector<16x128xf32>,
    return
  }
  func.func @transform_0(%arg0: i32, %arg1: i32) -> (i32, i32) {
    %c0_i32 = arith.constant 0 : i32
    %c0_i32_0 = arith.constant 0 : i32
    return %arg0, %c0_i32 : i32, i32
  }
  func.func @transform_1(%arg0: i32, %arg1: i32) -> (i32, i32) {
    %c0_i32 = arith.constant 0 : i32
    return %arg0, %arg1 : i32, i32
  }
  func.func @transform_2(%arg0: i32, %arg1: i32) -> (i32, i32) {
    %c0_i32 = arith.constant 0 : i32
    return %arg0, %arg1 : i32, i32
  }
}

</mosaic_0001>

<llo_original>
// kernel: tpu_custom_call.1
$region0: #{tpu_custom_call.1}
  #allocation0 [shape = 'u32[]', space=smem, size = 0x4, offset = 0x4, fixed_abs, tag = 'smem constant byte address 0x4 - core index']
  #allocation1 [shape = 'u32[72,128]{1,0:T(1,128)}', space=vmem, size = 0x9000, scoped, tag = 'internal scratch']
  %s0 = inlined_call_operand.vmem [shape: f32[32,1], index: 0, kind: input, shape index: {}]
  %s1 = inlined_call_operand.hbm [shape: f32[32,256], index: 1, kind: input, shape index: {}]
  %s2 = inlined_call_operand.hbm [shape: f32[32,256], index: 2, kind: output, shape index: {}]
  %s3 = sld [smem:[#allocation0]]
  $region45: #{tpu_custom_call.1} parent=0
    _
  %s5 = ssub.s32 1, %s3
  %s6 = scalar_select 0, %s5, %s3
  $region1: #{tpu_custom_call.1} parent=0
    #allocation2 [shape = 'u8[16384]{0}', space=vmem, size = 0x4000, scoped, tag = 'input window, operand 1']
    #allocation3 [shape = 's32[2]{0}', space=sflag, size = 0x8, scoped, tag = 'scoped memory for tpu_custom_call.1']
    #allocation4 [shape = 's32[2]{0}', space=sflag, size = 0x8, scoped, tag = 'scoped memory for tpu_custom_call.1']
    #allocation5 [shape = 'u8[16384]{0}', space=vmem, size = 0x4000, scoped, tag = 'output window, operand 0']
    %7 = vsyncpa [#allocation3], 0
    %s8 = scalar_lea.sflag [#allocation3], 1
    %9 = vsyncpa %s8, 0
    %10 = vsyncpa [#allocation4], 0
    %s11 = scalar_lea.sflag [#allocation4], 1
    %12 = vsyncpa %s11, 0
    loop: start=0, step=1, limit=6
    $region2: #{tpu_custom_call.1} parent=1 // loop_pre_header
      _
    $region3: #{tpu_custom_call.1} parent=1 // loop_header
      %s14 = sphi 0, %s18
      %p15 = scmp.ge.s32.totalorder %s14, 6
      %s21 = sphi 0, %s33
      %s22 = sphi 0, %s29
      %s23 = sphi 0, %s21
      %s24 = sphi 0, %s22
      %s25 = sphi 0, %s23
      %s26 = sphi 0, %s24
      %s36 = sphi 0, %s38
      %s39 = sphi 0, %s36
      %s40 = sphi 0, %s39
      %s56 = sphi 0, %s40
      %s64 = sphi 0, %s66
      %s67 = sphi 0, %s64
      %s68 = sphi 0, %s67
      %s84 = sphi 0, %s68
      %s92 = sphi 0, %s94
      %s95 = sphi 0, %s92
      %s96 = sphi 0, %s95
      %s112 = sphi 0, %s96
    $region4: #{tpu_custom_call.1} parent=1 // loop_header_branch
      %17 = sbr.rel (%p15) target = $region8
    $region5: #{tpu_custom_call.1} parent=1 // loop_body
      %s19 = ssub.s32 %s14, 1
      %s20 = ssub.s32 %s14, 2
      %s27 = sadd.s32 1, %s22
      %p28 = scmp.ge.s32.totalorder %s27, 2
      %s29 = scalar_select %p28, 0, %s27
      %s30 = sadd.s32 1, %s21
      %s31 = scalar_select %p28, %s30, %s21
      %p32 = scmp.ge.s32.totalorder %s31, 2
      %s33 = scalar_select %p32, 0, %s31
      %s34 = ssub.s32 %s21, %s33
      %p35 = scmp.eq.s32.totalorder %s34, 0
      %s37 = sadd.s32 %s36, 1
      %s38 = scalar_select %p35, %s36, %s37
      %p41 = pneg %p35
      %p42 = scmp.eq.s32.totalorder %s14, 3
      %p43 = por %p41, %p42
      %p44 = scmp.ne.s32.totalorder %s36, %s39
      %p45 = scmp.eq.s32.totalorder %s14, 0
      %p46 = por %p44, %p45
      %p47 = scmp.ne.s32.totalorder %s36, %s39
      %p48 = scmp.eq.s32.totalorder %s19, 3
      %p49 = por %p47, %p48
      %p50 = scmp.ne.s32.totalorder %s39, %s40
      %p51 = scmp.eq.s32.totalorder %s19, 0
      %p52 = por %p50, %p51
      %p53 = scmp.ne.s32.totalorder %s39, %s40
      %p54 = scmp.eq.s32.totalorder %s20, 3
      %p55 = por %p53, %p54
      %p57 = scmp.ne.s32.totalorder %s40, %s56
      %p58 = scmp.eq.s32.totalorder %s20, 0
      %p59 = por %p57, %p58
      %s60 = ssub.s32 %s21, %s33
      %s61 = ssub.s32 %s22, %s29
      %s62 = sor.u32 %s60, %s61
      %p63 = scmp.eq.s32.totalorder %s62, 0
      %s65 = sadd.s32 %s64, 1
      %s66 = scalar_select %p63, %s64, %s65
      %p69 = pneg %p63
      %p70 = scmp.eq.s32.totalorder %s14, 3
      %p71 = por %p69, %p70
      %p72 = scmp.ne.s32.totalorder %s64, %s67
      %p73 = scmp.eq.s32.totalorder %s14, 0
      %p74 = por %p72, %p73
      %p75 = scmp.ne.s32.totalorder %s64, %s67
      %p76 = scmp.eq.s32.totalorder %s19, 3
      %p77 = por %p75, %p76
      %p78 = scmp.ne.s32.totalorder %s67, %s68
      %p79 = scmp.eq.s32.totalorder %s19, 0
      %p80 = por %p78, %p79
      %p81 = scmp.ne.s32.totalorder %s67, %s68
      %p82 = scmp.eq.s32.totalorder %s20, 3
      %p83 = por %p81, %p82
      %p85 = scmp.ne.s32.totalorder %s68, %s84
      %p86 = scmp.eq.s32.totalorder %s20, 0
      %p87 = por %p85, %p86
      %s88 = ssub.s32 %s21, %s33
      %s89 = ssub.s32 %s22, %s29
      %s90 = sor.u32 %s88, %s89
      %p91 = scmp.eq.s32.totalorder %s90, 0
      %s93 = sadd.s32 %s92, 1
      %s94 = scalar_select %p91, %s92, %s93
      %p97 = pneg %p91
      %p98 = scmp.eq.s32.totalorder %s14, 3
      %p99 = por %p97, %p98
      %p100 = scmp.ne.s32.totalorder %s92, %s95
      %p101 = scmp.eq.s32.totalorder %s14, 0
      %p102 = por %p100, %p101
      %p103 = scmp.ne.s32.totalorder %s92, %s95
      %p104 = scmp.eq.s32.totalorder %s19, 3
      %p105 = por %p103, %p104
      %p106 = scmp.ne.s32.totalorder %s95, %s96
      %p107 = scmp.eq.s32.totalorder %s19, 0
      %p108 = por %p106, %p107
      %p109 = scmp.ne.s32.totalorder %s95, %s96
      %p110 = scmp.eq.s32.totalorder %s20, 3
      %p111 = por %p109, %p110
      %p113 = scmp.ne.s32.totalorder %s96, %s112
      %p114 = scmp.eq.s32.totalorder %s20, 0
      %p115 = por %p113, %p114
      %p116 = scmp.le.s32.totalorder 1, %s14
      %p117 = scmp.lt.s32.totalorder %s14, 5
      %p118 = pnand %p116, %p117
      %p119 = pneg %p118
      // Predicated region
      $region9: #{tpu_custom_call.1} parent=5 // pred_check
        _
      $region10: #{tpu_custom_call.1} parent=5 // pred_check_branch
        %121 = sbr.rel (%p118) target = $region12
      $region11: #{tpu_custom_call.1} parent=5 // pred_region
        %s122 = ssub.s32 %s14, 1
      $region12: #{tpu_custom_call.1} parent=5 // pred_fallthru
        _
      %p123 = scmp.lt.s32.totalorder %s14, 4
      // Predicated region
      $region13: #{tpu_custom_call.1} parent=5 // pred_check
        %p124 = pneg %p123
      $region14: #{tpu_custom_call.1} parent=5 // pred_check_branch
        %126 = sbr.rel (%p124) target = $region16
      $region15: #{tpu_custom_call.1} parent=5 // pred_region
        // Predicated region
        $region17: #{tpu_custom_call.1} parent=15 // pred_check
          %p127 = pneg %p46
        $region18: #{tpu_custom_call.1} parent=15 // pred_check_branch
          %129 = sbr.rel (%p127) target = $region20
        $region19: #{tpu_custom_call.1} parent=15 // pred_region
          %s130 = smul.u32 2, %s21
          %p131 = scmp.lt.s32.totalorder %s130, 3
          %s132 = scalar_select %p131, %s130, 3
          %s133 = smul.addr %s132, 8
          %s134 = scalar_lea.vmem %s0, %s133
          %s135 = smul.u32 2, %s21
        $region20: #{tpu_custom_call.1} parent=15 // pred_fallthru
          _
        // Predicated region
        $region21: #{tpu_custom_call.1} parent=15 // pred_check
          %p136 = pneg %p74
        $region22: #{tpu_custom_call.1} parent=15 // pred_check_branch
          %138 = sbr.rel (%p136) target = $region24
        $region23: #{tpu_custom_call.1} parent=15 // pred_region
          %s139 = sand.u32 %s64, 1
          %s140 = scalar_lea.sflag [#allocation3], %s139
          %s141 = sand.u32 %s64, 1
          %s142 = smul.addr %s141, 16
          %s143 = scalar_lea.vmem [#allocation2], %s142
          %s144 = smul.u32 2, %s21
          %146 = vsyncadd %s140, 0
          %s147 = smul.addr %s144, 2
          %s148 = sadd.s32 %s22, %s147
          %s149 = smul.addr %s148, 8
          %s150 = scalar_lea.hbm %s1, %s149
          %s151 = sshll.u32 %s150, 4
          %s152 = int_to_ptr.hbm [resolvable:$true] %s151
          %s153 = sshll.u32 %s143, 4
          %s154 = int_to_ptr.vmem [resolvable:$true] %s153
          %159 = dma.hbm_to_vmem [thread:$0]  %s152, 256, %s154, %s140, 256, 128, 8
        $region24: #{tpu_custom_call.1} parent=15 // pred_fallthru
          _
      $region16: #{tpu_custom_call.1} parent=5 // pred_fallthru
        _
      %p160 = scmp.le.s32.totalorder 1, %s14
      %p161 = scmp.lt.s32.totalorder %s14, 5
      %p162 = pnand %p160, %p161
      %p163 = pneg %p162
      // Predicated region
      $region25: #{tpu_custom_call.1} parent=5 // pred_check
        _
      $region26: #{tpu_custom_call.1} parent=5 // pred_check_branch
        %165 = sbr.rel (%p162) target = $region28
      $region27: #{tpu_custom_call.1} parent=5 // pred_region
        %s166 = ssub.s32 %s14, 1
        %s167 = sand.u32 %s67, 1
        %s168 = scalar_lea.sflag [#allocation3], %s167
        %s169 = sand.u32 %s67, 1
        %s170 = smul.addr %s169, 16
        %s171 = scalar_lea.vmem [#allocation2], %s170
        // Predicated region
        $region29: #{tpu_custom_call.1} parent=27 // pred_check
          %p172 = pneg %p80
        $region30: #{tpu_custom_call.1} parent=27 // pred_check_branch
          %174 = sbr.rel (%p172) target = $region32
        $region31: #{tpu_custom_call.1} parent=27 // pred_region
          %176 = dma.done %s168, 256
        $region32: #{tpu_custom_call.1} parent=27 // pred_fallthru
          _
        %s177 = smul.u32 2, %s23
        %p178 = scmp.lt.s32.totalorder %s177, 3
        %s179 = scalar_select %p178, %s177, 3
        %s180 = smul.addr %s179, 8
        %s181 = scalar_lea.vmem %s0, %s180
        %p182 = pneg %p52
        %p183 = pneg %p49
        %s184 = sand.u32 %s67, 1
        %s185 = scalar_lea.sflag [#allocation3], %s184
        %s186 = sand.u32 %s67, 1
        %s187 = smul.addr %s186, 16
        %s188 = scalar_lea.vmem [#allocation2], %s187
        %p189 = pneg %p80
        %p190 = pneg %p77
        %p191 = pneg %p108
        %p192 = pneg %p105
        %s193 = sand.u32 %s95, 1
        %s194 = scalar_lea.sflag [#allocation4], %s193
        %s195 = sand.u32 %s95, 1
        %s196 = smul.addr %s195, 16
        %s197 = scalar_lea.vmem [#allocation5], %s196
        %s198 = smul.u32 2, %s23
        %p199 = scmp.lt.s32.totalorder %s198, 3
        %s200 = scalar_select %p199, %s198, 3
        %s201 = smul.addr %s200, 8
        %s202 = scalar_lea.vmem %s0, %s201
        %s203 = smul.u32 2, %s23
        %s204 = smul.u32 2, %s23
        %s205 = smul.u32 2, %s23
        %v206 = vld [vmem:[%s171] sm:$0xff]
        %v207 = vld [vmem:[%s171 + $0x8] sm:$0xff]
        %v208 = vld [vmem:[%s202] sm:$0xff]
        %v209 = vld [vmem:[%s202 + $0x8] sm:$0xff]
        %211 = vset.pattern.permute.xlu0 0
        %212 = vperm.xlu0 %211, %v208
        %v213 = vpop.permute.xlu0 %212
        %216 = vset.pattern.permute.xlu0 0
        %217 = vperm.xlu0 %216, %v209
        %v218 = vpop.permute.xlu0 %217
        %v220 = vadd.f32 %v206, %v213
        %v221 = vadd.f32 %v207, %v218
        %v222 = vmax.f32 %v220, 0.0
        %v223 = vmax.f32 %v221, 0.0
        %224 = vst [vmem:[%s197] sm:$0xff] %v222
        %225 = vst [vmem:[%s197 + $0x8] sm:$0xff] %v223
        %s226 = sand.u32 %s95, 1
        %s227 = scalar_lea.sflag [#allocation4], %s226
        %s228 = sand.u32 %s95, 1
        %s229 = smul.addr %s228, 16
        %s230 = scalar_lea.vmem [#allocation5], %s229
        // Predicated region
        $region33: #{tpu_custom_call.1} parent=27 // pred_check
          %p231 = pneg %p105
        $region34: #{tpu_custom_call.1} parent=27 // pred_check_branch
          %233 = sbr.rel (%p231) target = $region36
        $region35: #{tpu_custom_call.1} parent=27 // pred_region
          %s234 = smul.u32 2, %s23
          %236 = vsyncadd %s227, 0
          %s237 = smul.addr %s234, 2
          %s238 = sadd.s32 %s24, %s237
          %s239 = smul.addr %s238, 8
          %s240 = scalar_lea.hbm %s2, %s239
          %s241 = sshll.u32 %s230, 4
          %s242 = int_to_ptr.vmem [resolvable:$true] %s241
          %s243 = sshll.u32 %s240, 4
          %s244 = int_to_ptr.hbm [resolvable:$true] %s243
          %249 = dma.vmem_to_hbm [thread:$0]  %s242, 256, %s244, %s227, 128, 256, 8
        $region36: #{tpu_custom_call.1} parent=27 // pred_fallthru
          _
      $region28: #{tpu_custom_call.1} parent=5 // pred_fallthru
        _
      %p250 = scmp.le.s32.totalorder 2, %s14
      // Predicated region
      $region37: #{tpu_custom_call.1} parent=5 // pred_check
        %p251 = pneg %p250
      $region38: #{tpu_custom_call.1} parent=5 // pred_check_branch
        %253 = sbr.rel (%p251) target = $region40
      $region39: #{tpu_custom_call.1} parent=5 // pred_region
        %s254 = ssub.s32 %s14, 2
        // Predicated region
        $region41: #{tpu_custom_call.1} parent=39 // pred_check
          %p255 = pneg %p111
        $region42: #{tpu_custom_call.1} parent=39 // pred_check_branch
          %257 = sbr.rel (%p255) target = $region44
        $region43: #{tpu_custom_call.1} parent=39 // pred_region
          %s258 = sand.u32 %s96, 1
          %s259 = scalar_lea.sflag [#allocation4], %s258
          %s260 = sand.u32 %s96, 1
          %s261 = smul.addr %s260, 16
          %s262 = scalar_lea.vmem [#allocation5], %s261
          %264 = dma.done %s259, 256
        $region44: #{tpu_custom_call.1} parent=39 // pred_fallthru
          _
      $region40: #{tpu_custom_call.1} parent=5 // pred_fallthru
        _
    $region6: #{tpu_custom_call.1} parent=1 // loop_footer
      %s18 = sadd.s32 1, %s14
    $region7: #{tpu_custom_call.1} parent=1 // loop_footer_branch
      %13 = sbr.rel target = $region3
    $region8: #{tpu_custom_call.1} parent=1 // loop_exit
      _
    %265 = vsyncpa [#allocation3], 1
    %s266 = scalar_lea.sflag [#allocation3], 1
    %267 = vsyncpa %s266, 1
    %268 = vsyncpa [#allocation4], 1
    %s269 = scalar_lea.sflag [#allocation4], 1
    %270 = vsyncpa %s269, 1

</llo_original>
